<compile_context>
chip_gen: v7x
topology: tpu7x:2x2x1
jax: 0.10.0
libtpu: 0.0.40
codegen_flags: <defaults>
</compile_context>

<pallas_src>
import math
import functools

import jax
import jax.numpy as jnp
from jax.experimental import pallas as pl
from jax.experimental.pallas import tpu as pltpu

INI = 0.01
NEG_BIG = -1e18


def _default_vmem_limit():
    try:
        cap = int(pltpu.get_tpu_info().vmem_capacity_bytes)
        return max(16 * 1024 * 1024, (cap * 3) // 4)
    except Exception:
        return 48 * 1024 * 1024


VMEM_LIMIT = _default_vmem_limit()


# ---------------------------------------------------------------------------
# Kernel 1a: fused two-output feature projection
#   attn_mem is read from HBM once; attn_feat and hop_feat are written directly
#   (no post-hoc XLA slicing of a concatenated feat2).
# ---------------------------------------------------------------------------
def _proj_kernel(x_ref, wa_ref, wh_ref, a_ref, h_ref):
    x = x_ref[...]
    a_ref[...] = jnp.dot(x, wa_ref[...], preferred_element_type=jnp.float32)
    h_ref[...] = jnp.dot(x, wh_ref[...], preferred_element_type=jnp.float32)


def project_features(x2, wa, wh, max_block_rows=1024):
    """x2: [R, Din] -> (x2 @ wa, x2 @ wh), each [R, H]. bf16 MXU, f32 accumulate."""
    R, K = x2.shape
    H = wa.shape[1]
    x2 = x2.astype(jnp.bfloat16)
    wa = wa.astype(jnp.bfloat16)
    wh = wh.astype(jnp.bfloat16)
    if R <= max_block_rows:
        br, Rp = R, R
    else:
        br = max_block_rows
        Rp = ((R + br - 1) // br) * br
        if Rp != R:
            x2 = jnp.pad(x2, ((0, Rp - R), (0, 0)))
    a, h = pl.pallas_call(
        _proj_kernel,
        out_shape=(jax.ShapeDtypeStruct((Rp, H), jnp.float32),
                   jax.ShapeDtypeStruct((Rp, H), jnp.float32)),
        grid=(Rp // br,),
        in_specs=[
            pl.BlockSpec((br, K), lambda i: (i, 0)),
            pl.BlockSpec((K, H), lambda i: (0, 0)),
            pl.BlockSpec((K, H), lambda i: (0, 0)),
        ],
        out_specs=(pl.BlockSpec((br, H), lambda i: (i, 0)),
                   pl.BlockSpec((br, H), lambda i: (i, 0))),
        compiler_params=pltpu.CompilerParams(
            dimension_semantics=("parallel",),
            vmem_limit_bytes=VMEM_LIMIT),
    )(x2, wa, wh)
    return a[:R], h[:R]


# ---------------------------------------------------------------------------
# Kernel 1b: generic row-tiled matmul (hoisted LSTM layer-0 input-gate matmul)
# ---------------------------------------------------------------------------
def _matmul_kernel(x_ref, w_ref, o_ref):
    o_ref[...] = jnp.dot(x_ref[...], w_ref[...], preferred_element_type=jnp.float32)


def matmul_rows(x2, w, max_block_rows=1024):
    """x2: [R, K], w: [K, N] -> [R, N] (f32), row-tiled + pipelined over the grid."""
    R, K = x2.shape
    N = w.shape[1]
    if R <= max_block_rows:
        br, Rp = R, R
    else:
        br = max_block_rows
        Rp = ((R + br - 1) // br) * br
        if Rp != R:
            x2 = jnp.pad(x2, ((0, Rp - R), (0, 0)))
    out = pl.pallas_call(
        _matmul_kernel,
        out_shape=jax.ShapeDtypeStruct((Rp, N), jnp.float32),
        grid=(Rp // br,),
        in_specs=[
            pl.BlockSpec((br, K), lambda i: (i, 0)),
            pl.BlockSpec((K, N), lambda i: (0, 0)),
        ],
        out_specs=pl.BlockSpec((br, N), lambda i: (i, 0)),
        compiler_params=pltpu.CompilerParams(
            dimension_semantics=("parallel",),
            vmem_limit_bytes=VMEM_LIMIT),
    )(x2, w)
    return out[:R]


# ---------------------------------------------------------------------------
# Kernel 2: multi-layer unidirectional LSTM.
#   Grid iterates over T-chunks ("arbitrary"); the per-timestep recurrence runs
#   in an in-kernel fori_loop. Layer-0 input gates (x @ W_ih0) are precomputed
#   outside the recurrence (xg). Weights are constant-index VMEM blocks; h/c
#   state persists in VMEM scratch across chunks.
# ---------------------------------------------------------------------------
def _lstm_kernel(xg_ref, h0_ref, c0_ref, whh_ref, wihr_ref, b_ref,
                 out_ref, h_sc, c_sc, *, n_layer, n_hidden, t_chunk):
    H = n_hidden

    @pl.when(pl.program_id(0) == 0)
    def _():
        h_sc[...] = h0_ref[...]
        c_sc[...] = c0_ref[...]

    def gate_update(gates, c_prev):
        i_g = jax.nn.sigmoid(gates[:, 0:H])
        f_g = jax.nn.sigmoid(gates[:, H:2 * H])
        g_g = jnp.tanh(gates[:, 2 * H:3 * H])
        o_g = jax.nn.sigmoid(gates[:, 3 * H:4 * H])
        c_new = f_g * c_prev + i_g * g_g
        h_new = o_g * jnp.tanh(c_new)
        return h_new, c_new

    def step(i, val):
        # layer 0: input-gate contribution precomputed on the MXU outside the loop
        gates0 = (xg_ref[i]
                  + jnp.dot(h_sc[0], whh_ref[0], preferred_element_type=jnp.float32)
                  + b_ref[0])
        h_new, c_new = gate_update(gates0, c_sc[0])
        h_sc[0] = h_new
        c_sc[0] = c_new
        inp = h_new
        for l in range(1, n_layer):
            # two dots (no per-step concat relayout)
            gates = (jnp.dot(inp, wihr_ref[l - 1], preferred_element_type=jnp.float32)
                     + jnp.dot(h_sc[l], whh_ref[l], preferred_element_type=jnp.float32)
                     + b_ref[l])
            h_new, c_new = gate_update(gates, c_sc[l])
            h_sc[l] = h_new
            c_sc[l] = c_new
            inp = h_new
            # TODO(synk): nn.LSTM inter-layer dropout is training-only (no-op in eval); omitted.
        out_ref[i] = inp
        return val

    jax.lax.fori_loop(0, t_chunk, step, 0)


def run_lstm(xg_seq, h0, c0, w_hhT, w_ihrT, bias, n_layer, n_hidden,
             max_t_chunk=32):
    """xg_seq: [T, B, 4H] precomputed x@W_ih0 -> top-layer hidden states [T, B, H]."""
    T1, B, _ = xg_seq.shape
    H = n_hidden
    if T1 <= max_t_chunk:
        tc, nchunks, T1p = T1, 1, T1
    else:
        tc = max_t_chunk
        nchunks = (T1 + tc - 1) // tc
        T1p = nchunks * tc
        if T1p != T1:
            xg_seq = jnp.pad(xg_seq, ((0, T1p - T1), (0, 0), (0, 0)))
    Lr = w_ihrT.shape[0]
    kernel = functools.partial(_lstm_kernel, n_layer=n_layer, n_hidden=H, t_chunk=tc)
    out = pl.pallas_call(
        kernel,
        out_shape=jax.ShapeDtypeStruct((T1p, B, H), jnp.float32),
        grid=(nchunks,),
        in_specs=[
            pl.BlockSpec((tc, B, 4 * H), lambda c: (c, 0, 0)),       # xg chunk
            pl.BlockSpec((n_layer, B, H), lambda c: (0, 0, 0)),      # h0
            pl.BlockSpec((n_layer, B, H), lambda c: (0, 0, 0)),      # c0
            pl.BlockSpec((n_layer, H, 4 * H), lambda c: (0, 0, 0)),  # W_hh (all layers)
            pl.BlockSpec((Lr, H, 4 * H), lambda c: (0, 0, 0)),       # W_ih layers>0
            pl.BlockSpec((n_layer, 1, 4 * H), lambda c: (0, 0, 0)),  # bias
        ],
        out_specs=pl.BlockSpec((tc, B, H), lambda c: (c, 0, 0)),
        scratch_shapes=[
            pltpu.VMEM((n_layer, B, H), jnp.float32),                # h state
            pltpu.VMEM((n_layer, B, H), jnp.float32),                # c state
        ],
        compiler_params=pltpu.CompilerParams(
            dimension_semantics=("arbitrary",),
            vmem_limit_bytes=VMEM_LIMIT),
    )(xg_seq, h0, c0, w_hhT, w_ihrT, bias)
    return out[:T1]


# ---------------------------------------------------------------------------
# Kernel 3: fused pointer attention — all n_hop glimpse hops + final score in
# one kernel. Grid over (batch-chunk, query-chunk) keeps the rank-4 tanh
# intermediate bounded at [bc, tq, Ns, H]; weights resident in VMEM.
# ---------------------------------------------------------------------------
def _pointer_attn_kernel(hopf_ref, attnf_ref, q_ref, mask_ref,
                         hop_wq_ref, hop_v_ref, attn_wq_ref, attn_v_ref,
                         out_ref, *, n_hop):
    hopf = hopf_ref[...]                       # [bc, Ns, H]
    query = q_ref[...]                         # [bc, tq, H]
    valid = mask_ref[...] > 0.5                # [bc, 1, Ns]
    bc, tq, H = query.shape

    def scores(feat, q, wq, v2):
        # hoisted batched q @ Wq: one MXU matmul for the whole tile
        qw = jnp.dot(q.reshape(bc * tq, H), wq,
                     preferred_element_type=jnp.float32).reshape(bc, tq, H)
        s = jnp.tanh(feat[:, None, :, :] + qw[:, :, None, :])   # [bc, tq, Ns, H]
        # H-axis reduction stays on the XLU (kernel is EUP-bound; reduce is free filler)
        return jnp.sum(s * v2[None, None, :, :], axis=-1)       # [bc, tq, Ns]

    for _ in range(n_hop):
        sc = scores(hopf, query, hop_wq_ref[...], hop_v_ref[...])
        sc = jnp.where(valid, sc, NEG_BIG)
        sc = sc - jnp.max(sc, axis=-1, keepdims=True)
        e = jnp.exp(sc)
        p = e * pl.reciprocal(jnp.sum(e, axis=-1, keepdims=True), approx=True)
        query = jnp.einsum('bts,bsh->bth', p, hopf,
                           preferred_element_type=jnp.float32)

    out_ref[...] = scores(attnf_ref[...], query, attn_wq_ref[...], attn_v_ref[...])


def pointer_attention(hop_feat, attn_feat, query, maskf,
                      hop_wq, hop_v, attn_wq, attn_v, n_hop,
                      max_batch_chunk=4, max_tq_chunk=16):
    B, Ns, H = hop_feat.shape
    Tq = query.shape[1]

    bc = B if B <= max_batch_chunk else max_batch_chunk
    nb = (B + bc - 1) // bc
    Bp = nb * bc

    if Tq <= max_tq_chunk:
        tq, nq, Tqp = Tq, 1, Tq
    else:
        tq = max_tq_chunk                      # multiple of 8 -> tile-aligned sublanes
        nq = (Tq + tq - 1) // tq
        Tqp = nq * tq

    if Bp != B:
        pad = Bp - B
        hop_feat = jnp.pad(hop_feat, ((0, pad), (0, 0), (0, 0)))
        attn_feat = jnp.pad(attn_feat, ((0, pad), (0, 0), (0, 0)))
        query = jnp.pad(query, ((0, pad), (0, 0), (0, 0)))
        maskf = jnp.pad(maskf, ((0, pad), (0, 0)))
    if Tqp != Tq:
        query = jnp.pad(query, ((0, 0), (0, Tqp - Tq), (0, 0)))

    mask3 = maskf.reshape(Bp, 1, Ns)
    hop_v2 = hop_v.reshape(1, H)
    attn_v2 = attn_v.reshape(1, H)
    kernel = functools.partial(_pointer_attn_kernel, n_hop=n_hop)
    out = pl.pallas_call(
        kernel,
        out_shape=jax.ShapeDtypeStruct((Bp, Tqp, Ns), jnp.float32),
        grid=(nb, nq),
        in_specs=[
            pl.BlockSpec((bc, Ns, H), lambda b, q: (b, 0, 0)),
            pl.BlockSpec((bc, Ns, H), lambda b, q: (b, 0, 0)),
            pl.BlockSpec((bc, tq, H), lambda b, q: (b, q, 0)),
            pl.BlockSpec((bc, 1, Ns), lambda b, q: (b, 0, 0)),
            pl.BlockSpec((H, H), lambda b, q: (0, 0)),
            pl.BlockSpec((1, H), lambda b, q: (0, 0)),
            pl.BlockSpec((H, H), lambda b, q: (0, 0)),
            pl.BlockSpec((1, H), lambda b, q: (0, 0)),
        ],
        out_specs=pl.BlockSpec((bc, tq, Ns), lambda b, q: (b, q, 0)),
        compiler_params=pltpu.CompilerParams(
            dimension_semantics=("parallel", "parallel"),
            vmem_limit_bytes=VMEM_LIMIT),
    )(hop_feat, attn_feat, query, mask3, hop_wq, hop_v2, attn_wq, attn_v2)
    return out[:B, :Tq]


# ---------------------------------------------------------------------------
# Forward pass (glue in plain JAX, hot paths in Pallas kernels above)
# ---------------------------------------------------------------------------
def lstm_pointer_net_forward(params, attn_mem, mem_sizes, lstm_in, n_hop):
    B, Ns, Din = attn_mem.shape
    n_layer, H = params["init_h"].shape

    # _prepare: fused two-output projection (one HBM read of attn_mem)
    attn_feat, hop_feat = project_features(
        attn_mem.reshape(B * Ns, Din), params["attn_wm"], params["hop_wm"])
    attn_feat = attn_feat.reshape(B, Ns, H)
    hop_feat = hop_feat.reshape(B, Ns, H)

    valid = jnp.arange(Ns)[None, :] < mem_sizes[:, None]                       # [B, Ns]
    # (matches PyTorch max_pooling: fully-masked rows yield -1e18)
    init_i = jnp.max(jnp.where(valid[..., None], attn_mem, NEG_BIG),
                     axis=1, keepdims=True)                                    # [B, 1, Din]

    # LSTM over [init_i ; lstm_in]; layer-0 input gates hoisted out of the loop
    x = jnp.concatenate([init_i, lstm_in], axis=1)                             # [B, T+1, Din]
    # TODO(synk): the two layout transposes around the LSTM are left to XLA;
    # folding them into the projection / pointer kernels is possible but omitted.
    x_seq = jnp.transpose(x, (1, 0, 2))                                        # [T+1, B, Din]
    T1 = x_seq.shape[0]
    xg = matmul_rows(x_seq.reshape(T1 * B, Din).astype(jnp.bfloat16),
                     params["w_ih0T"].astype(jnp.bfloat16)).reshape(T1, B, 4 * H)

    h0 = jnp.broadcast_to(params["init_h"][:, None, :], (n_layer, B, H)).astype(jnp.float32)
    c0 = jnp.broadcast_to(params["init_c"][:, None, :], (n_layer, B, H)).astype(jnp.float32)

    if n_layer > 1:
        w_ihr = params["w_ihrT"]
    else:
        w_ihr = jnp.zeros((1, H, 4 * H), jnp.float32)  # dummy, never read in-kernel

    q_seq = run_lstm(xg, h0, c0, params["w_hhT"], w_ihr, params["bias"],
                     n_layer, H)                                               # [T+1, B, H]
    query = jnp.transpose(q_seq, (1, 0, 2))                                    # [B, T+1, H]

    # fused glimpse hops + final (unnormalized) pointer scores
    maskf = valid.astype(jnp.float32)
    return pointer_attention(hop_feat, attn_feat, query, maskf,
                             params["hop_wq"], params["hop_v"],
                             params["attn_wq"], params["attn_v"], n_hop)


# ---------------------------------------------------------------------------
# Pure-JAX reference (same math, f32 throughout) for correctness check
# ---------------------------------------------------------------------------
def _ref_forward(params, attn_mem, mem_sizes, lstm_in, n_hop):
    B, Ns, Din = attn_mem.shape
    n_layer, H = params["init_h"].shape
    attn_feat = attn_mem @ params["attn_wm"]
    hop_feat = attn_mem @ params["hop_wm"]
    valid = jnp.arange(Ns)[None, :] < mem_sizes[:, None]
    init_i = jnp.max(jnp.where(valid[..., None], attn_mem, NEG_BIG), axis=1, keepdims=True)
    x = jnp.concatenate([init_i, lstm_in], axis=1)
    h = jnp.broadcast_to(params["init_h"][:, None, :], (n_layer, B, H))
    c = jnp.broadcast_to(params["init_c"][:, None, :], (n_layer, B, H))
    outs = []
    for t in range(x.shape[1]):
        inp = x[:, t, :]
        new_h, new_c = [], []
        for l in range(n_layer):
            wiT = params["w_ih0T"] if l == 0 else params["w_ihrT"][l - 1]
            gates = inp @ wiT + h[l] @ params["w_hhT"][l] + params["bias"][l]
            i_g = jax.nn.sigmoid(gates[:, :H])
            f_g = jax.nn.sigmoid(gates[:, H:2 * H])
            g_g = jnp.tanh(gates[:, 2 * H:3 * H])
            o_g = jax.nn.sigmoid(gates[:, 3 * H:])
            cn = f_g * c[l] + i_g * g_g
            hn = o_g * jnp.tanh(cn)
            new_h.append(hn)
            new_c.append(cn)
            inp = hn
        h, c = jnp.stack(new_h), jnp.stack(new_c)
        outs.append(inp)
    query = jnp.stack(outs, axis=1)

    def score_fn(feat, q, wq, v):
        s = jnp.tanh(feat[:, None, :, :] + (q @ wq)[:, :, None, :])
        return jnp.sum(s * v[None, None, None, :], axis=-1)

    for _ in range(n_hop):
        sc = score_fn(hop_feat, query, params["hop_wq"], params["hop_v"])
        sc = jnp.where(valid[:, None, :], sc, NEG_BIG)
        p = jax.nn.softmax(sc, axis=-1)
        query = p @ hop_feat
    return score_fn(attn_feat, query, params["attn_wq"], params["attn_v"])


# ---------------------------------------------------------------------------
# Deterministic parameter construction (shapes from LSTMPointerNet.__init__)
# ---------------------------------------------------------------------------
def init_params(key, input_dim, n_hidden, n_layer):
    ks = jax.random.split(key, 12)
    H = n_hidden

    def xavier(k, shape):
        std = math.sqrt(2.0 / (shape[0] + shape[1]))
        return std * jax.random.normal(k, shape, jnp.float32)

    ls = 1.0 / math.sqrt(H)
    w_ih0T = jax.random.uniform(ks[0], (input_dim, 4 * H), jnp.float32, -ls, ls)
    w_ihrT = jax.random.uniform(ks[1], (n_layer - 1, H, 4 * H), jnp.float32, -ls, ls)
    w_hhT = jax.random.uniform(ks[2], (n_layer, H, 4 * H), jnp.float32, -ls, ls)
    bias = jax.random.uniform(ks[3], (n_layer, 1, 4 * H), jnp.float32, -ls, ls)

    return dict(
        init_h=jax.random.uniform(ks[4], (n_layer, H), jnp.float32, -INI, INI),
        init_c=jax.random.uniform(ks[5], (n_layer, H), jnp.float32, -INI, INI),
        attn_wm=xavier(ks[6], (input_dim, H)),
        attn_wq=xavier(ks[7], (H, H)),
        attn_v=jax.random.uniform(ks[8], (H,), jnp.float32, -INI, INI),
        hop_wm=xavier(ks[9], (input_dim, H)),
        hop_wq=xavier(ks[10], (H, H)),
        hop_v=jax.random.uniform(ks[11], (H,), jnp.float32, -INI, INI),
        w_ih0T=w_ih0T, w_ihrT=w_ihrT, w_hhT=w_hhT, bias=bias,
    )


if __name__ == "__main__":
    B, Ns, Din, H, n_layer, n_hop, T = 2, 8, 64, 32, 2, 2, 4

    root = jax.random.PRNGKey(0)
    k_mem, k_in, k_par = jax.random.split(root, 3)
    attn_mem = jax.random.normal(k_mem, (B, Ns, Din), jnp.float32)
    lstm_in = jax.random.normal(k_in, (B, T, Din), jnp.float32)
    mem_sizes = jnp.array([Ns, 5], dtype=jnp.int32)
    params = init_params(k_par, Din, H, n_layer)

    out = lstm_pointer_net_forward(params, attn_mem, mem_sizes, lstm_in, n_hop)
    out = jax.block_until_ready(out)
    assert out.shape == (B, T + 1, Ns), out.shape

    ref = jax.block_until_ready(_ref_forward(params, attn_mem, mem_sizes, lstm_in, n_hop))
    max_err = float(jnp.max(jnp.abs(out - ref)))
    # bf16 MXU inputs on the two large projections (vs. pure-f32 reference) plus
    # the approximate softmax reciprocal -> a slightly looser tolerance.
    assert max_err < 2e-2, f"mismatch vs reference: {max_err}"

    print("KERNEL_OK")
</pallas_src>

<mosaic_0001>
module attributes {stable_mosaic.version = 11 : i64} {
  func.func @_proj_kernel(%arg0: i32, %arg1: memref<16x64xbf16, #tpu.memory_space<vmem>>, %arg2: memref<64x32xbf16, #tpu.memory_space<vmem>>, %arg3: memref<64x32xbf16, #tpu.memory_space<vmem>>, %arg4: memref<16x32xf32, #tpu.memory_space<vmem>>, %arg5: memref<16x32xf32, #tpu.memory_space<vmem>>) attributes {dimension_semantics = [#tpu.dimension_semantics<parallel>], iteration_bounds = array<i64: 1>, scalar_prefetch = 0 : i64, scratch_operands = 0 : i64, tpu.core_type = #tpu.core_type<tc>, window_params = [{transform_indices = @transform_0, window_bounds = array<i64: 16, 64>}, {pipeline_mode = #tpu.pipeline_mode<synchronous>, transform_indices = @transform_1, window_bounds = array<i64: 64, 32>}, {pipeline_mode = #tpu.pipeline_mode<synchronous>, transform_indices = @transform_2, window_bounds = array<i64: 64, 32>}, {transform_indices = @transform_3, window_bounds = array<i64: 16, 32>}, {transform_indices = @transform_4, window_bounds = array<i64: 16, 32>}]} {
    %c0 = arith.constant 0 : index
    %c0_0 = arith.constant 0 : index
    %0 = vector.load %arg1[%c0, %c0_0] : memref<16x64xbf16, #tpu.memory_space<vmem>>, vector<16x64xbf16>
    %c0_1 = arith.constant 0 : index
    %c0_2 = arith.constant 0 : index
    %1 = vector.load %arg2[%c0_1, %c0_2] : memref<64x32xbf16, #tpu.memory_space<vmem>>, vector<64x32xbf16>
    %cst = arith.constant dense<0.000000e+00> : vector<16x32xf32>
    %2 = tpu.matmul %0, %1, %cst {dimension_numbers = #tpu.dot_dimension_numbers<[1], [0], [0], [1], [0, 0, 1, 1], [], []>} : vector<16x64xbf16>, vector<64x32xbf16>, vector<16x32xf32> -> vector<16x32xf32>
    %c0_3 = arith.constant 0 : index
    %c0_4 = arith.constant 0 : index
    %3 = vector.load %arg4[%c0_3, %c0_4] : memref<16x32xf32, #tpu.memory_space<vmem>>, vector<16x32xf32>
    tpu.vector_store %arg4[%c0_3, %c0_4], %2 {strides = array<i32>} : memref<16x32xf32, #tpu.memory_space<vmem>>, vector<16x32xf32>,
    %c0_5 = arith.constant 0 : index
    %c0_6 = arith.constant 0 : index
    %4 = vector.load %arg3[%c0_5, %c0_6] : memref<64x32xbf16, #tpu.memory_space<vmem>>, vector<64x32xbf16>
    %cst_7 = arith.constant dense<0.000000e+00> : vector<16x32xf32>
    %5 = tpu.matmul %0, %4, %cst_7 {dimension_numbers = #tpu.dot_dimension_numbers<[1], [0], [0], [1], [0, 0, 1, 1], [], []>} : vector<16x64xbf16>, vector<64x32xbf16>, vector<16x32xf32> -> vector<16x32xf32>
    %c0_8 = arith.constant 0 : index
    %c0_9 = arith.constant 0 : index
    %6 = vector.load %arg5[%c0_8, %c0_9] : memref<16x32xf32, #tpu.memory_space<vmem>>, vector<16x32xf32>
    tpu.vector_store %arg5[%c0_8, %c0_9], %5 {strides = array<i32>} : memref<16x32xf32, #tpu.memory_space<vmem>>, vector<16x32xf32>,
    return
  }
  func.func @transform_0(%arg0: i32) -> (i32, i32) {
    %c0_i32 = arith.constant 0 : i32
    %c0_i32_0 = arith.constant 0 : i32
    return %arg0, %c0_i32 : i32, i32
  }
  func.func @transform_1(%arg0: i32) -> (i32, i32) {
    %c0_i32 = arith.constant 0 : i32
    %c0_i32_0 = arith.constant 0 : i32
    %c0_i32_1 = arith.constant 0 : i32
    return %c0_i32, %c0_i32_0 : i32, i32
  }
  func.func @transform_2(%arg0: i32) -> (i32, i32) {
    %c0_i32 = arith.constant 0 : i32
    %c0_i32_0 = arith.constant 0 : i32
    %c0_i32_1 = arith.constant 0 : i32
    return %c0_i32, %c0_i32_0 : i32, i32
  }
  func.func @transform_3(%arg0: i32) -> (i32, i32) {
    %c0_i32 = arith.constant 0 : i32
    %c0_i32_0 = arith.constant 0 : i32
    return %arg0, %c0_i32 : i32, i32
  }
  func.func @transform_4(%arg0: i32) -> (i32, i32) {
    %c0_i32 = arith.constant 0 : i32
    %c0_i32_0 = arith.constant 0 : i32
    return %arg0, %c0_i32 : i32, i32
  }
}

</mosaic_0001>

<llo_original>
// kernel: tpu_custom_call.1
$region0: #{tpu_custom_call.1}
  #allocation0 [shape = 'u32[]', space=smem, size = 0x4, offset = 0x4, fixed_abs, tag = 'smem constant byte address 0x4 - core index']
  #allocation1 [shape = 'u32[144,128]{1,0:T(1,128)}', space=vmem, size = 0x12000, scoped, tag = 'internal scratch']
  %s0 = inlined_call_operand.vmem [shape: bf16[16,64], index: 0, kind: input, shape index: {}]
  %s1 = inlined_call_operand.vmem [shape: bf16[64,32], index: 1, kind: input, shape index: {}]
  %s2 = inlined_call_operand.vmem [shape: bf16[64,32], index: 2, kind: input, shape index: {}]
  %s3 = inlined_call_operand.hbm [shape: f32[16,32], index: 3, kind: output, shape index: {0}]
  %s4 = inlined_call_operand.hbm [shape: f32[16,32], index: 4, kind: output, shape index: {1}]
  %5 = xla_tuple %s3, %s4
  %s6 = sld [smem:[#allocation0]]
  $region30: #{tpu_custom_call.1} parent=0
    _
  %s8 = ssub.s32 1, %s6
  %s9 = scalar_select 0, %s8, %s6
  $region1: #{tpu_custom_call.1} parent=0
    #allocation2 [shape = 'u8[8192]{0}', space=vmem, size = 0x2000, scoped, tag = 'output window, operand 0, single buffered']
    #allocation3 [shape = 's32[1]{0}', space=sflag, size = 0x4, scoped, tag = 'scoped memory for tpu_custom_call.1']
    #allocation4 [shape = 'u8[8192]{0}', space=vmem, size = 0x2000, scoped, tag = 'output window, operand 1, single buffered']
    #allocation5 [shape = 's32[1]{0}', space=sflag, size = 0x4, scoped, tag = 'scoped memory for tpu_custom_call.1']
    %10 = vsyncpa [#allocation3], 0
    %11 = vsyncpa [#allocation5], 0
    // Predicated region
    $region2: #{tpu_custom_call.1} parent=1 // pred_check
      _
    $region3: #{tpu_custom_call.1} parent=1 // pred_check_branch
      %13 = sbr.rel (0) target = $region5
    $region4: #{tpu_custom_call.1} parent=1 // pred_region
      _
    $region5: #{tpu_custom_call.1} parent=1 // pred_fallthru
      _
    // Predicated region
    $region6: #{tpu_custom_call.1} parent=1 // pred_check
      _
    $region7: #{tpu_custom_call.1} parent=1 // pred_check_branch
      %15 = sbr.rel (0) target = $region9
    $region8: #{tpu_custom_call.1} parent=1 // pred_region
      _
    $region9: #{tpu_custom_call.1} parent=1 // pred_fallthru
      _
    // Predicated region
    $region10: #{tpu_custom_call.1} parent=1 // pred_check
      _
    $region11: #{tpu_custom_call.1} parent=1 // pred_check_branch
      %17 = sbr.rel (0) target = $region13
    $region12: #{tpu_custom_call.1} parent=1 // pred_region
      _
    $region13: #{tpu_custom_call.1} parent=1 // pred_fallthru
      _
    %v19 = vld [vmem:[%s0] sm:$0xf]
    %v20 = vld [vmem:[%s0 + $0x4] sm:$0xf]
    %v21 = vld [vmem:[%s1] sm:$0xf]
    %v22 = vld [vmem:[%s1 + $0x4] sm:$0xf]
    %v23 = vld [vmem:[%s1 + $0x8] sm:$0xf]
    %v24 = vld [vmem:[%s1 + $0xc] sm:$0xf]
    %v25 = vld [vmem:[%s1 + $0x10] sm:$0xf]
    %v26 = vld [vmem:[%s1 + $0x14] sm:$0xf]
    %v27 = vld [vmem:[%s1 + $0x18] sm:$0xf]
    %v28 = vld [vmem:[%s1 + $0x1c] sm:$0xf]
    %v31 = vunpack.c.l.b16 %v19
    %v32 = vunpack.c.l.b16 %v20
    %v33 = vpack.c.b16 %v32, %v31
    %v42 = vunpack.c.l.b16 %v21
    %v43 = vunpack.c.l.b16 %v22
    %v44 = vunpack.c.l.b16 %v23
    %v45 = vunpack.c.l.b16 %v24
    %v46 = vunpack.c.l.b16 %v25
    %v47 = vunpack.c.l.b16 %v26
    %v48 = vunpack.c.l.b16 %v27
    %v49 = vunpack.c.l.b16 %v28
    %v50 = vpack.c.b16 %v43, %v42
    %v51 = vpack.c.b16 %v45, %v44
    %v52 = vpack.c.b16 %v47, %v46
    %v53 = vpack.c.b16 %v49, %v48
    %vm58 = vcmask 523264
    %v60 = vsel %vm58, %v33, 0
    %62 = vmatprep.subr.bf16.mxu0 0
    %63 = vmatpush1.bf16.msra.mxu0 %v50
    %64 = vmatprep.subr.bf16.mxu0 0
    %65 = vmatpush1.bf16.msra.mxu0 %v51
    %66 = vmatprep.subr.bf16.mxu0 0
    %67 = vmatpush1.bf16.msra.mxu0 %v52
    %68 = vmatprep.subr.bf16.mxu0 0
    %69 = vmatpush1.bf16.msra.mxu0 %v53
    %70 = vmatprep.subr.bf16.mxu0 0
    %71 = vmatpush1.bf16.msra.mxu0 0
    %72 = vmatprep.subr.bf16.mxu0 0
    %73 = vmatpush1.bf16.msra.mxu0 0
    %74 = vmatprep.subr.bf16.mxu0 0
    %75 = vmatpush1.bf16.msra.mxu0 0
    %76 = vmatprep.subr.bf16.mxu0 0
    %77 = vmatpush1.bf16.msra.mxu0 0
    %78 = vmatprep.subr.bf16.mxu0 0
    %79 = vmatpush1.bf16.msra.mxu0 0
    %80 = vmatprep.subr.bf16.mxu0 0
    %81 = vmatpush1.bf16.msra.mxu0 0
    %82 = vmatprep.subr.bf16.mxu0 0
    %83 = vmatpush1.bf16.msra.mxu0 0
    %84 = vmatprep.subr.bf16.mxu0 0
    %85 = vmatpush1.bf16.msra.mxu0 0
    %86 = vmatprep.subr.bf16.mxu0 0
    %87 = vmatpush1.bf16.msra.mxu0 0
    %88 = vmatprep.subr.bf16.mxu0 0
    %89 = vmatpush1.bf16.msra.mxu0 0
    %90 = vmatprep.subr.bf16.mxu0 0
    %91 = vmatpush1.bf16.msra.mxu0 0
    %92 = vmatprep.subr.bf16.mxu0 0
    %93 = vmatpush1.bf16.msra.mxu0 0
    %94 = vmatprep.mubr.bf16.mxu0 0
    %95 = vmatmul.mubr.bf16.gmra.mrb[0].mxu0 %v60
    %v96 = vpop.f32.mrb[0].mxu0
    %v97 = vadd.f32 0.0, %v96
    %v98 = vpop.f32.mrb[0].mxu0
    %v99 = vpop.f32.mrb[0].mxu0
    %v100 = vadd.f32 0.0, %v99
    %v101 = vpop.f32.mrb[0].mxu0
    %102 = vdwg.mxu0
    %vm103 = vcmask 261120
    %104 = vst.msk [vmem:[#allocation2] sm:$0xff] %vm103, %v97
    %105 = vst.msk [vmem:[#allocation2 + $0x8] sm:$0xff] %vm103, %v100
    %v106 = vld [vmem:[%s2] sm:$0xf]
    %v107 = vld [vmem:[%s2 + $0x4] sm:$0xf]
    %v108 = vld [vmem:[%s2 + $0x8] sm:$0xf]
    %v109 = vld [vmem:[%s2 + $0xc] sm:$0xf]
    %v110 = vld [vmem:[%s2 + $0x10] sm:$0xf]
    %v111 = vld [vmem:[%s2 + $0x14] sm:$0xf]
    %v112 = vld [vmem:[%s2 + $0x18] sm:$0xf]
    %v113 = vld [vmem:[%s2 + $0x1c] sm:$0xf]
    %v122 = vunpack.c.l.b16 %v106
    %v123 = vunpack.c.l.b16 %v107
    %v124 = vunpack.c.l.b16 %v108
    %v125 = vunpack.c.l.b16 %v109
    %v126 = vunpack.c.l.b16 %v110
    %v127 = vunpack.c.l.b16 %v111
    %v128 = vunpack.c.l.b16 %v112
    %v129 = vunpack.c.l.b16 %v113
    %v130 = vpack.c.b16 %v123, %v122
    %v131 = vpack.c.b16 %v125, %v124
    %v132 = vpack.c.b16 %v127, %v126
    %v133 = vpack.c.b16 %v129, %v128
    %138 = vmatprep.subr.bf16.mxu0 0
    %139 = vmatpush1.bf16.msra.mxu0 %v130
    %140 = vmatprep.subr.bf16.mxu0 0
    %141 = vmatpush1.bf16.msra.mxu0 %v131
    %142 = vmatprep.subr.bf16.mxu0 0
    %143 = vmatpush1.bf16.msra.mxu0 %v132
    %144 = vmatprep.subr.bf16.mxu0 0
    %145 = vmatpush1.bf16.msra.mxu0 %v133
    %146 = vmatprep.subr.bf16.mxu0 0
    %147 = vmatpush1.bf16.msra.mxu0 0
    %148 = vmatprep.subr.bf16.mxu0 0
    %149 = vmatpush1.bf16.msra.mxu0 0
    %150 = vmatprep.subr.bf16.mxu0 0
    %151 = vmatpush1.bf16.msra.mxu0 0
    %152 = vmatprep.subr.bf16.mxu0 0
    %153 = vmatpush1.bf16.msra.mxu0 0
    %154 = vmatprep.subr.bf16.mxu0 0
    %155 = vmatpush1.bf16.msra.mxu0 0
    %156 = vmatprep.subr.bf16.mxu0 0
    %157 = vmatpush1.bf16.msra.mxu0 0
    %158 = vmatprep.subr.bf16.mxu0 0
    %159 = vmatpush1.bf16.msra.mxu0 0
    %160 = vmatprep.subr.bf16.mxu0 0
    %161 = vmatpush1.bf16.msra.mxu0 0
    %162 = vmatprep.subr.bf16.mxu0 0
    %163 = vmatpush1.bf16.msra.mxu0 0
    %164 = vmatprep.subr.bf16.mxu0 0
    %165 = vmatpush1.bf16.msra.mxu0 0
    %166 = vmatprep.subr.bf16.mxu0 0
    %167 = vmatpush1.bf16.msra.mxu0 0
    %168 = vmatprep.subr.bf16.mxu0 0
    %169 = vmatpush1.bf16.msra.mxu0 0
    %170 = vmatprep.mubr.bf16.mxu0 0
    %171 = vmatmul.mubr.bf16.gmra.mrb[0].mxu0 %v60
    %v172 = vpop.f32.mrb[0].mxu0
    %v173 = vadd.f32 0.0, %v172
    %v174 = vpop.f32.mrb[0].mxu0
    %v175 = vpop.f32.mrb[0].mxu0
    %v176 = vadd.f32 0.0, %v175
    %v177 = vpop.f32.mrb[0].mxu0
    %178 = vdwg.mxu0
    %179 = vst.msk [vmem:[#allocation4] sm:$0xff] %vm103, %v173
    %180 = vst.msk [vmem:[#allocation4 + $0x8] sm:$0xff] %vm103, %v176
    // Predicated region
    $region14: #{tpu_custom_call.1} parent=1 // pred_check
      _
    $region15: #{tpu_custom_call.1} parent=1 // pred_check_branch
      %182 = sbr.rel (0) target = $region17
    $region16: #{tpu_custom_call.1} parent=1 // pred_region
      %s184 = ssub.s32 256, 256
      %185 = vsyncadd [#allocation3], %s184
      %s186 = sshll.u32 [#allocation2], 4
      %s187 = int_to_ptr.vmem [resolvable:$true] %s186
      %192 = dma.vmem_to_hbm [thread:$0]  %s187, 256, %s3, [#allocation3], 128, 128, 8
    $region17: #{tpu_custom_call.1} parent=1 // pred_fallthru
      _
    // Predicated region
    $region18: #{tpu_custom_call.1} parent=1 // pred_check
      _
    $region19: #{tpu_custom_call.1} parent=1 // pred_check_branch
      %194 = sbr.rel (0) target = $region21
    $region20: #{tpu_custom_call.1} parent=1 // pred_region
      %s196 = ssub.s32 256, 256
      %197 = vsyncadd [#allocation5], %s196
      %s198 = sshll.u32 [#allocation4], 4
      %s199 = int_to_ptr.vmem [resolvable:$true] %s198
      %204 = dma.vmem_to_hbm [thread:$0]  %s199, 256, %s4, [#allocation5], 128, 128, 8
    $region21: #{tpu_custom_call.1} parent=1 // pred_fallthru
      _
    // Predicated region
    $region22: #{tpu_custom_call.1} parent=1 // pred_check
      _
    $region23: #{tpu_custom_call.1} parent=1 // pred_check_branch
      %206 = sbr.rel (0) target = $region25
    $region24: #{tpu_custom_call.1} parent=1 // pred_region
      %207 = dma.done [#allocation3], 256
    $region25: #{tpu_custom_call.1} parent=1 // pred_fallthru
      _
    // Predicated region
    $region26: #{tpu_custom_call.1} parent=1 // pred_check
      _
    $region27: #{tpu_custom_call.1} parent=1 // pred_check_branch
      %209 = sbr.rel (0) target = $region29
    $region28: #{tpu_custom_call.1} parent=1 // pred_region
      %210 = dma.done [#allocation5], 256
    $region29: #{tpu_custom_call.1} parent=1 // pred_fallthru
      _
    %211 = vsyncpa [#allocation3], 1
    %212 = vsyncpa [#allocation5], 1

</llo_original>
